<compile_context>
chip_gen: v7x
topology: tpu7x:2x2x1
jax: 0.10.0
libtpu: 0.0.40
codegen_flags: <defaults>
</compile_context>

<pallas_src>
import functools

import jax
import jax.numpy as jnp
from jax.experimental import pallas as pl
from jax.experimental.pallas import tpu as pltpu


_VPU_MAX_C = 16                         # <= this channel count: VPU FMAs, no MXU
_BLOCK_BYTE_BUDGET = 2 * 1024 * 1024    # target bytes of x per block
_MAX_BATCH_PER_BLOCK = 8                # cap static unroll over batch inside a block


def _lifting_kernel(x_ref, wn_ref, wd_ref, o_ref, *, use_vpu):
    # x_ref / o_ref : (bn, C, T) tile  -- channels on sublanes, pixels on lanes
    # wn_ref        : (C, C) resident f32  = W_neg           (multiplies x)
    # wd_ref        : (C, C) resident f32  = W_pos - W_neg   (multiplies relu(x))
    # out = Wn @ x + Wd @ relu(x)
    wn = wn_ref[...]
    wd = wd_ref[...]
    bn, c, _ = x_ref.shape

    for b in range(bn):                        # small static unroll over batch
        xb = x_ref[b].astype(jnp.float32)      # (C, T)
        pb = jnp.maximum(xb, 0.0)              # relu(x)
        if use_vpu:
            # Tiny K: 2*C broadcast-FMA passes over the (C, T) slab on the VPU.
            acc = wn[:, 0:1] * xb[0:1, :] + wd[:, 0:1] * pb[0:1, :]
            for ci in range(1, c):
                acc = acc + wn[:, ci:ci + 1] * xb[ci:ci + 1, :]
                acc = acc + wd[:, ci:ci + 1] * pb[ci:ci + 1, :]
        else:
            acc = jnp.dot(wn, xb, preferred_element_type=jnp.float32)
            acc = acc + jnp.dot(wd, pb, preferred_element_type=jnp.float32)
        o_ref[b] = acc.astype(o_ref.dtype)


def lifting_layer_multid(x_nchw, weight):
    """x_nchw: (N, C, H, W); weight: (C, 2C, 1, 1) as in nn.Conv2d (no bias)."""
    N, C, H, W = x_nchw.shape
    assert weight.shape[0] == C and weight.shape[1] == 2 * C
    HW = H * W

    # Weight prep (wrapper side, cast once): Wn and Wd = Wp - Wn.
    w2d = weight.reshape(C, 2 * C).astype(jnp.float32)
    wn = w2d[:, C:]          # multiplies x
    wd = w2d[:, :C] - wn     # multiplies relu(x)

    # NCHW is already channel-major: free reshape, no transposes anywhere.
    x3 = x_nchw.reshape(N, C, HW)

    # Block sizing: ~2 MiB of x per block so per-step overhead is amortized.
    elem = jnp.dtype(x_nchw.dtype).itemsize
    pix_budget = max(128, _BLOCK_BYTE_BUDGET // (C * elem))
    if HW <= pix_budget:
        bhw = HW                                           # full dim -> always legal
        bn = max(1, min(N, _MAX_BATCH_PER_BLOCK, pix_budget // max(HW, 1)))
    else:
        bn = 1
        bhw = (pix_budget // 128) * 128                    # lane-dense multiple of 128

    grid = (pl.cdiv(N, bn), pl.cdiv(HW, bhw))
    use_vpu = C <= _VPU_MAX_C

    out3 = pl.pallas_call(
        functools.partial(_lifting_kernel, use_vpu=use_vpu),
        out_shape=jax.ShapeDtypeStruct((N, C, HW), x_nchw.dtype),
        grid_spec=pltpu.PrefetchScalarGridSpec(
            num_scalar_prefetch=0,
            grid=grid,
            in_specs=[
                pl.BlockSpec((bn, C, bhw), lambda i, j: (i, 0, j)),  # x tile
                pl.BlockSpec((C, C), lambda i, j: (0, 0)),           # Wn (resident)
                pl.BlockSpec((C, C), lambda i, j: (0, 0)),           # Wd (resident)
            ],
            out_specs=pl.BlockSpec((bn, C, bhw), lambda i, j: (i, 0, j)),
        ),
        compiler_params=pltpu.CompilerParams(
            dimension_semantics=("parallel", "parallel")),
    )(x3, wn, wd)

    return out3.reshape(N, C, H, W)


def _reference(x_nchw, weight):
    """Pure-JAX reference matching the PyTorch forward."""
    pos = jnp.maximum(x_nchw, 0.0)
    neg = -jnp.maximum(-x_nchw, 0.0)
    cat = jnp.concatenate([pos, neg], axis=1)                    # (N, 2C, H, W)
    w2d = weight.reshape(weight.shape[0], weight.shape[1])       # (C, 2C)
    return jnp.einsum("nkhw,ck->nchw", cat, w2d)


if __name__ == "__main__":
    key = jax.random.PRNGKey(0)

    # --- small-C config (VPU FMA path), matches the module's typical use ---
    kx, kw, key = jax.random.split(key, 3)
    N, C, H, W = 2, 4, 16, 16
    x = jax.random.normal(kx, (N, C, H, W), dtype=jnp.float32)
    fan_in = 2 * C
    bound = 1.0 / jnp.sqrt(jnp.float32(fan_in))
    weight = jax.random.uniform(kw, (C, 2 * C, 1, 1), dtype=jnp.float32,
                                minval=-bound, maxval=bound)

    y = jax.block_until_ready(lifting_layer_multid(x, weight))
    y_ref = _reference(x, weight)
    assert y.shape == (N, C, H, W)
    assert jnp.allclose(y, y_ref, atol=1e-5, rtol=1e-5)

    # --- larger-C config (MXU path) to exercise the other branch ---
    kx2, kw2, key = jax.random.split(key, 3)
    N2, C2, H2, W2 = 2, 32, 16, 16
    x2 = jax.random.normal(kx2, (N2, C2, H2, W2), dtype=jnp.float32)
    bound2 = 1.0 / jnp.sqrt(jnp.float32(2 * C2))
    weight2 = jax.random.uniform(kw2, (C2, 2 * C2, 1, 1), dtype=jnp.float32,
                                 minval=-bound2, maxval=bound2)

    y2 = jax.block_until_ready(lifting_layer_multid(x2, weight2))
    y2_ref = _reference(x2, weight2)
    assert y2.shape == (N2, C2, H2, W2)
    assert jnp.allclose(y2, y2_ref, atol=1e-5, rtol=1e-5)

    print("KERNEL_OK")
</pallas_src>

<mosaic_0001>
module attributes {stable_mosaic.version = 11 : i64} {
  func.func @_lifting_kernel(%arg0: i32, %arg1: i32, %arg2: memref<2x4x256xf32, #tpu.memory_space<vmem>>, %arg3: memref<4x4xf32, #tpu.memory_space<vmem>>, %arg4: memref<4x4xf32, #tpu.memory_space<vmem>>, %arg5: memref<2x4x256xf32, #tpu.memory_space<vmem>>) attributes {dimension_semantics = [#tpu.dimension_semantics<parallel>, #tpu.dimension_semantics<parallel>], iteration_bounds = array<i64: 1, 1>, scalar_prefetch = 0 : i64, scratch_operands = 0 : i64, tpu.core_type = #tpu.core_type<tc>, window_params = [{transform_indices = @transform_0, window_bounds = array<i64: 2, 4, 256>}, {pipeline_mode = #tpu.pipeline_mode<synchronous>, transform_indices = @transform_1, window_bounds = array<i64: 4, 4>}, {pipeline_mode = #tpu.pipeline_mode<synchronous>, transform_indices = @transform_2, window_bounds = array<i64: 4, 4>}, {transform_indices = @transform_3, window_bounds = array<i64: 2, 4, 256>}]} {
    %c0 = arith.constant 0 : index
    %c0_0 = arith.constant 0 : index
    %0 = vector.load %arg3[%c0, %c0_0] : memref<4x4xf32, #tpu.memory_space<vmem>>, vector<4x4xf32>
    %c0_1 = arith.constant 0 : index
    %c0_2 = arith.constant 0 : index
    %1 = vector.load %arg4[%c0_1, %c0_2] : memref<4x4xf32, #tpu.memory_space<vmem>>, vector<4x4xf32>
    %c0_3 = arith.constant 0 : index
    %c0_4 = arith.constant 0 : index
    %c0_5 = arith.constant 0 : index
    %2 = vector.load %arg2[%c0_3, %c0_4, %c0_5] : memref<2x4x256xf32, #tpu.memory_space<vmem>>, vector<1x4x256xf32>
    %3 = vector.shape_cast %2 : vector<1x4x256xf32> to vector<4x256xf32>
    %cst = arith.constant 0.000000e+00 : f32
    %4 = vector.broadcast %cst : f32 to vector<4x256xf32>
    %5 = arith.maximumf %3, %4 : vector<4x256xf32>
    %6 = vector.extract_strided_slice %0 {offsets = [0, 0], sizes = [4, 1], strides = [1, 1]} : vector<4x4xf32> to vector<4x1xf32>
    %7 = vector.extract_strided_slice %3 {offsets = [0, 0], sizes = [1, 256], strides = [1, 1]} : vector<4x256xf32> to vector<1x256xf32>
    %8 = vector.broadcast %6 : vector<4x1xf32> to vector<4x256xf32>
    %9 = vector.broadcast %7 : vector<1x256xf32> to vector<4x256xf32>
    %10 = arith.mulf %8, %9 : vector<4x256xf32>
    %11 = vector.extract_strided_slice %1 {offsets = [0, 0], sizes = [4, 1], strides = [1, 1]} : vector<4x4xf32> to vector<4x1xf32>
    %12 = vector.extract_strided_slice %5 {offsets = [0, 0], sizes = [1, 256], strides = [1, 1]} : vector<4x256xf32> to vector<1x256xf32>
    %13 = vector.broadcast %11 : vector<4x1xf32> to vector<4x256xf32>
    %14 = vector.broadcast %12 : vector<1x256xf32> to vector<4x256xf32>
    %15 = arith.mulf %13, %14 : vector<4x256xf32>
    %16 = arith.addf %10, %15 : vector<4x256xf32>
    %17 = vector.extract_strided_slice %0 {offsets = [0, 1], sizes = [4, 1], strides = [1, 1]} : vector<4x4xf32> to vector<4x1xf32>
    %18 = vector.extract_strided_slice %3 {offsets = [1, 0], sizes = [1, 256], strides = [1, 1]} : vector<4x256xf32> to vector<1x256xf32>
    %19 = vector.broadcast %17 : vector<4x1xf32> to vector<4x256xf32>
    %20 = vector.broadcast %18 : vector<1x256xf32> to vector<4x256xf32>
    %21 = arith.mulf %19, %20 : vector<4x256xf32>
    %22 = arith.addf %16, %21 : vector<4x256xf32>
    %23 = vector.extract_strided_slice %1 {offsets = [0, 1], sizes = [4, 1], strides = [1, 1]} : vector<4x4xf32> to vector<4x1xf32>
    %24 = vector.extract_strided_slice %5 {offsets = [1, 0], sizes = [1, 256], strides = [1, 1]} : vector<4x256xf32> to vector<1x256xf32>
    %25 = vector.broadcast %23 : vector<4x1xf32> to vector<4x256xf32>
    %26 = vector.broadcast %24 : vector<1x256xf32> to vector<4x256xf32>
    %27 = arith.mulf %25, %26 : vector<4x256xf32>
    %28 = arith.addf %22, %27 : vector<4x256xf32>
    %29 = vector.extract_strided_slice %0 {offsets = [0, 2], sizes = [4, 1], strides = [1, 1]} : vector<4x4xf32> to vector<4x1xf32>
    %30 = vector.extract_strided_slice %3 {offsets = [2, 0], sizes = [1, 256], strides = [1, 1]} : vector<4x256xf32> to vector<1x256xf32>
    %31 = vector.broadcast %29 : vector<4x1xf32> to vector<4x256xf32>
    %32 = vector.broadcast %30 : vector<1x256xf32> to vector<4x256xf32>
    %33 = arith.mulf %31, %32 : vector<4x256xf32>
    %34 = arith.addf %28, %33 : vector<4x256xf32>
    %35 = vector.extract_strided_slice %1 {offsets = [0, 2], sizes = [4, 1], strides = [1, 1]} : vector<4x4xf32> to vector<4x1xf32>
    %36 = vector.extract_strided_slice %5 {offsets = [2, 0], sizes = [1, 256], strides = [1, 1]} : vector<4x256xf32> to vector<1x256xf32>
    %37 = vector.broadcast %35 : vector<4x1xf32> to vector<4x256xf32>
    %38 = vector.broadcast %36 : vector<1x256xf32> to vector<4x256xf32>
    %39 = arith.mulf %37, %38 : vector<4x256xf32>
    %40 = arith.addf %34, %39 : vector<4x256xf32>
    %41 = vector.extract_strided_slice %0 {offsets = [0, 3], sizes = [4, 1], strides = [1, 1]} : vector<4x4xf32> to vector<4x1xf32>
    %42 = vector.extract_strided_slice %3 {offsets = [3, 0], sizes = [1, 256], strides = [1, 1]} : vector<4x256xf32> to vector<1x256xf32>
    %43 = vector.broadcast %41 : vector<4x1xf32> to vector<4x256xf32>
    %44 = vector.broadcast %42 : vector<1x256xf32> to vector<4x256xf32>
    %45 = arith.mulf %43, %44 : vector<4x256xf32>
    %46 = arith.addf %40, %45 : vector<4x256xf32>
    %47 = vector.extract_strided_slice %1 {offsets = [0, 3], sizes = [4, 1], strides = [1, 1]} : vector<4x4xf32> to vector<4x1xf32>
    %48 = vector.extract_strided_slice %5 {offsets = [3, 0], sizes = [1, 256], strides = [1, 1]} : vector<4x256xf32> to vector<1x256xf32>
    %49 = vector.broadcast %47 : vector<4x1xf32> to vector<4x256xf32>
    %50 = vector.broadcast %48 : vector<1x256xf32> to vector<4x256xf32>
    %51 = arith.mulf %49, %50 : vector<4x256xf32>
    %52 = arith.addf %46, %51 : vector<4x256xf32>
    %c0_6 = arith.constant 0 : index
    %c0_7 = arith.constant 0 : index
    %c0_8 = arith.constant 0 : index
    %53 = vector.load %arg5[%c0_6, %c0_7, %c0_8] : memref<2x4x256xf32, #tpu.memory_space<vmem>>, vector<1x4x256xf32>
    %54 = vector.shape_cast %53 : vector<1x4x256xf32> to vector<4x256xf32>
    %55 = vector.shape_cast %52 : vector<4x256xf32> to vector<1x4x256xf32>
    tpu.vector_store %arg5[%c0_6, %c0_7, %c0_8], %55 {strides = array<i32>} : memref<2x4x256xf32, #tpu.memory_space<vmem>>, vector<1x4x256xf32>,
    %c1 = arith.constant 1 : index
    %c0_9 = arith.constant 0 : index
    %c0_10 = arith.constant 0 : index
    %56 = vector.load %arg2[%c1, %c0_9, %c0_10] : memref<2x4x256xf32, #tpu.memory_space<vmem>>, vector<1x4x256xf32>
    %57 = vector.shape_cast %56 : vector<1x4x256xf32> to vector<4x256xf32>
    %cst_11 = arith.constant 0.000000e+00 : f32
    %58 = vector.broadcast %cst_11 : f32 to vector<4x256xf32>
    %59 = arith.maximumf %57, %58 : vector<4x256xf32>
    %60 = vector.extract_strided_slice %0 {offsets = [0, 0], sizes = [4, 1], strides = [1, 1]} : vector<4x4xf32> to vector<4x1xf32>
    %61 = vector.extract_strided_slice %57 {offsets = [0, 0], sizes = [1, 256], strides = [1, 1]} : vector<4x256xf32> to vector<1x256xf32>
    %62 = vector.broadcast %60 : vector<4x1xf32> to vector<4x256xf32>
    %63 = vector.broadcast %61 : vector<1x256xf32> to vector<4x256xf32>
    %64 = arith.mulf %62, %63 : vector<4x256xf32>
    %65 = vector.extract_strided_slice %1 {offsets = [0, 0], sizes = [4, 1], strides = [1, 1]} : vector<4x4xf32> to vector<4x1xf32>
    %66 = vector.extract_strided_slice %59 {offsets = [0, 0], sizes = [1, 256], strides = [1, 1]} : vector<4x256xf32> to vector<1x256xf32>
    %67 = vector.broadcast %65 : vector<4x1xf32> to vector<4x256xf32>
    %68 = vector.broadcast %66 : vector<1x256xf32> to vector<4x256xf32>
    %69 = arith.mulf %67, %68 : vector<4x256xf32>
    %70 = arith.addf %64, %69 : vector<4x256xf32>
    %71 = vector.extract_strided_slice %0 {offsets = [0, 1], sizes = [4, 1], strides = [1, 1]} : vector<4x4xf32> to vector<4x1xf32>
    %72 = vector.extract_strided_slice %57 {offsets = [1, 0], sizes = [1, 256], strides = [1, 1]} : vector<4x256xf32> to vector<1x256xf32>
    %73 = vector.broadcast %71 : vector<4x1xf32> to vector<4x256xf32>
    %74 = vector.broadcast %72 : vector<1x256xf32> to vector<4x256xf32>
    %75 = arith.mulf %73, %74 : vector<4x256xf32>
    %76 = arith.addf %70, %75 : vector<4x256xf32>
    %77 = vector.extract_strided_slice %1 {offsets = [0, 1], sizes = [4, 1], strides = [1, 1]} : vector<4x4xf32> to vector<4x1xf32>
    %78 = vector.extract_strided_slice %59 {offsets = [1, 0], sizes = [1, 256], strides = [1, 1]} : vector<4x256xf32> to vector<1x256xf32>
    %79 = vector.broadcast %77 : vector<4x1xf32> to vector<4x256xf32>
    %80 = vector.broadcast %78 : vector<1x256xf32> to vector<4x256xf32>
    %81 = arith.mulf %79, %80 : vector<4x256xf32>
    %82 = arith.addf %76, %81 : vector<4x256xf32>
    %83 = vector.extract_strided_slice %0 {offsets = [0, 2], sizes = [4, 1], strides = [1, 1]} : vector<4x4xf32> to vector<4x1xf32>
    %84 = vector.extract_strided_slice %57 {offsets = [2, 0], sizes = [1, 256], strides = [1, 1]} : vector<4x256xf32> to vector<1x256xf32>
    %85 = vector.broadcast %83 : vector<4x1xf32> to vector<4x256xf32>
    %86 = vector.broadcast %84 : vector<1x256xf32> to vector<4x256xf32>
    %87 = arith.mulf %85, %86 : vector<4x256xf32>
    %88 = arith.addf %82, %87 : vector<4x256xf32>
    %89 = vector.extract_strided_slice %1 {offsets = [0, 2], sizes = [4, 1], strides = [1, 1]} : vector<4x4xf32> to vector<4x1xf32>
    %90 = vector.extract_strided_slice %59 {offsets = [2, 0], sizes = [1, 256], strides = [1, 1]} : vector<4x256xf32> to vector<1x256xf32>
    %91 = vector.broadcast %89 : vector<4x1xf32> to vector<4x256xf32>
    %92 = vector.broadcast %90 : vector<1x256xf32> to vector<4x256xf32>
    %93 = arith.mulf %91, %92 : vector<4x256xf32>
    %94 = arith.addf %88, %93 : vector<4x256xf32>
    %95 = vector.extract_strided_slice %0 {offsets = [0, 3], sizes = [4, 1], strides = [1, 1]} : vector<4x4xf32> to vector<4x1xf32>
    %96 = vector.extract_strided_slice %57 {offsets = [3, 0], sizes = [1, 256], strides = [1, 1]} : vector<4x256xf32> to vector<1x256xf32>
    %97 = vector.broadcast %95 : vector<4x1xf32> to vector<4x256xf32>
    %98 = vector.broadcast %96 : vector<1x256xf32> to vector<4x256xf32>
    %99 = arith.mulf %97, %98 : vector<4x256xf32>
    %100 = arith.addf %94, %99 : vector<4x256xf32>
    %101 = vector.extract_strided_slice %1 {offsets = [0, 3], sizes = [4, 1], strides = [1, 1]} : vector<4x4xf32> to vector<4x1xf32>
    %102 = vector.extract_strided_slice %59 {offsets = [3, 0], sizes = [1, 256], strides = [1, 1]} : vector<4x256xf32> to vector<1x256xf32>
    %103 = vector.broadcast %101 : vector<4x1xf32> to vector<4x256xf32>
    %104 = vector.broadcast %102 : vector<1x256xf32> to vector<4x256xf32>
    %105 = arith.mulf %103, %104 : vector<4x256xf32>
    %106 = arith.addf %100, %105 : vector<4x256xf32>
    %c1_12 = arith.constant 1 : index
    %c0_13 = arith.constant 0 : index
    %c0_14 = arith.constant 0 : index
    %107 = vector.load %arg5[%c1_12, %c0_13, %c0_14] : memref<2x4x256xf32, #tpu.memory_space<vmem>>, vector<1x4x256xf32>
    %108 = vector.shape_cast %107 : vector<1x4x256xf32> to vector<4x256xf32>
    %109 = vector.shape_cast %106 : vector<4x256xf32> to vector<1x4x256xf32>
    tpu.vector_store %arg5[%c1_12, %c0_13, %c0_14], %109 {strides = array<i32>} : memref<2x4x256xf32, #tpu.memory_space<vmem>>, vector<1x4x256xf32>,
    return
  }
  func.func @transform_0(%arg0: i32, %arg1: i32) -> (i32, i32, i32) {
    %c0_i32 = arith.constant 0 : i32
    %c0_i32_0 = arith.constant 0 : i32
    return %arg0, %c0_i32, %arg1 : i32, i32, i32
  }
  func.func @transform_1(%arg0: i32, %arg1: i32) -> (i32, i32) {
    %c0_i32 = arith.constant 0 : i32
    %c0_i32_0 = arith.constant 0 : i32
    %c0_i32_1 = arith.constant 0 : i32
    return %c0_i32, %c0_i32_0 : i32, i32
  }
  func.func @transform_2(%arg0: i32, %arg1: i32) -> (i32, i32) {
    %c0_i32 = arith.constant 0 : i32
    %c0_i32_0 = arith.constant 0 : i32
    %c0_i32_1 = arith.constant 0 : i32
    return %c0_i32, %c0_i32_0 : i32, i32
  }
  func.func @transform_3(%arg0: i32, %arg1: i32) -> (i32, i32, i32) {
    %c0_i32 = arith.constant 0 : i32
    %c0_i32_0 = arith.constant 0 : i32
    return %arg0, %c0_i32, %arg1 : i32, i32, i32
  }
}

</mosaic_0001>

<llo_original>
// kernel: tpu_custom_call.1
$region0: #{tpu_custom_call.1}
  #allocation0 [shape = 'u32[]', space=smem, size = 0x4, offset = 0x4, fixed_abs, tag = 'smem constant byte address 0x4 - core index']
  #allocation1 [shape = 'u32[144,128]{1,0:T(1,128)}', space=vmem, size = 0x12000, scoped, tag = 'internal scratch']
  %s0 = inlined_call_operand.hbm [shape: f32[2,4,256], index: 0, kind: input, shape index: {}]
  %s1 = inlined_call_operand.hbm [shape: f32[4,4], index: 1, kind: input, shape index: {}]
  %s2 = inlined_call_operand.vmem [shape: f32[4,4], index: 2, kind: input, shape index: {}]
  %s3 = inlined_call_operand.hbm [shape: f32[2,4,256], index: 3, kind: output, shape index: {}]
  %s4 = sld [smem:[#allocation0]]
  $region30: #{tpu_custom_call.1} parent=0
    _
  %s6 = ssub.s32 1, %s4
  %s7 = scalar_select 0, %s6, %s4
  $region1: #{tpu_custom_call.1} parent=0
    #allocation2 [shape = 'u8[8192]{0}', space=vmem, size = 0x2000, scoped, tag = 'input window, operand 0, single buffered']
    #allocation3 [shape = 's32[1]{0}', space=sflag, size = 0x4, scoped, tag = 'scoped memory for tpu_custom_call.1']
    #allocation4 [shape = 's32[1]{0}', space=sflag, size = 0x4, scoped, tag = 'scoped memory for tpu_custom_call.1']
    #allocation5 [shape = 'u8[2048]{0}', space=vmem, size = 0x800, scoped, tag = 'input window, operand 1, single buffered']
    #allocation6 [shape = 's32[1]{0}', space=sflag, size = 0x4, scoped, tag = 'scoped memory for tpu_custom_call.1']
    #allocation7 [shape = 'u8[8192]{0}', space=vmem, size = 0x2000, scoped, tag = 'output window, operand 0, single buffered']
    %8 = vsyncpa [#allocation3], 0
    %9 = vsyncpa [#allocation6], 0
    %10 = vsyncpa [#allocation4], 0
    // Predicated region
    $region2: #{tpu_custom_call.1} parent=1 // pred_check
      _
    $region3: #{tpu_custom_call.1} parent=1 // pred_check_branch
      %12 = sbr.rel (0) target = $region5
    $region4: #{tpu_custom_call.1} parent=1 // pred_region
      %s14 = ssub.s32 256, 256
      %15 = vsyncadd [#allocation3], %s14
      %s16 = sshll.u32 [#allocation2], 4
      %s17 = int_to_ptr.vmem [resolvable:$true] %s16
      %22 = dma.hbm_to_vmem [thread:$0]  %s0, 256, %s17, [#allocation3], 128, 128, 8
    $region5: #{tpu_custom_call.1} parent=1 // pred_fallthru
      _
    // Predicated region
    $region6: #{tpu_custom_call.1} parent=1 // pred_check
      _
    $region7: #{tpu_custom_call.1} parent=1 // pred_check_branch
      %24 = sbr.rel (0) target = $region9
    $region8: #{tpu_custom_call.1} parent=1 // pred_region
      %s26 = ssub.s32 64, 64
      %27 = vsyncadd [#allocation6], %s26
      %s29 = sshll.u32 [#allocation5], 4
      %s30 = int_to_ptr.vmem [resolvable:$true] %s29
      %32 = dma.hbm_to_vmem [thread:$0]  %s1, 64, %s30, [#allocation6]
    $region9: #{tpu_custom_call.1} parent=1 // pred_fallthru
      _
    // Predicated region
    $region10: #{tpu_custom_call.1} parent=1 // pred_check
      _
    $region11: #{tpu_custom_call.1} parent=1 // pred_check_branch
      %34 = sbr.rel (0) target = $region13
    $region12: #{tpu_custom_call.1} parent=1 // pred_region
      _
    $region13: #{tpu_custom_call.1} parent=1 // pred_fallthru
      _
    // Predicated region
    $region14: #{tpu_custom_call.1} parent=1 // pred_check
      _
    $region15: #{tpu_custom_call.1} parent=1 // pred_check_branch
      %36 = sbr.rel (0) target = $region17
    $region16: #{tpu_custom_call.1} parent=1 // pred_region
      %37 = dma.done [#allocation3], 256
    $region17: #{tpu_custom_call.1} parent=1 // pred_fallthru
      _
    // Predicated region
    $region18: #{tpu_custom_call.1} parent=1 // pred_check
      _
    $region19: #{tpu_custom_call.1} parent=1 // pred_check_branch
      %39 = sbr.rel (0) target = $region21
    $region20: #{tpu_custom_call.1} parent=1 // pred_region
      %40 = dma.done [#allocation6], 64
    $region21: #{tpu_custom_call.1} parent=1 // pred_fallthru
      _
    %v41 = vld [vmem:[#allocation5] sm:$0xf]
    %v42 = vld [vmem:[%s2] sm:$0xf]
    %v43 = vld [vmem:[#allocation2] sm:$0xff]
    %v44 = vmax.f32 %v43, 0.0
    %46 = vset.pattern.permute.xlu0 0
    %47 = vperm.xlu0 %46, %v41
    %v48 = vpop.permute.xlu0 %47
    %v51 = vlaneseq
    %v52 = vshrl.u32 %v51, 7
    %v53 = vsub.s32 0, %v52
    %v54 = vrot.slane %v43, %v53
    %v55 = vlaneseq
    %v56 = vshrl.u32 %v55, 7
    %v57 = vsub.s32 4, %v56
    %v58 = vrot.slane %v43, %v57
    %v61 = vlaneseq
    %v62 = vshrl.u32 %v61, 7
    %v63 = vsub.s32 0, %v62
    %v64 = vrot.slane %v54, %v63
    %v65 = vlaneseq
    %v66 = vshrl.u32 %v65, 7
    %v67 = vsub.s32 0, %v66
    %v68 = vrot.slane %v58, %v67
    %v69 = vmul.f32 %v48, %v64
    %v70 = vmul.f32 %v48, %v68
    %72 = vset.pattern.permute.xlu0 0
    %73 = vperm.xlu0 %72, %v42
    %v74 = vpop.permute.xlu0 %73
    %v77 = vlaneseq
    %v78 = vshrl.u32 %v77, 7
    %v79 = vsub.s32 0, %v78
    %v80 = vrot.slane %v44, %v79
    %v81 = vlaneseq
    %v82 = vshrl.u32 %v81, 7
    %v83 = vsub.s32 4, %v82
    %v84 = vrot.slane %v44, %v83
    %v87 = vlaneseq
    %v88 = vshrl.u32 %v87, 7
    %v89 = vsub.s32 0, %v88
    %v90 = vrot.slane %v80, %v89
    %v91 = vlaneseq
    %v92 = vshrl.u32 %v91, 7
    %v93 = vsub.s32 0, %v92
    %v94 = vrot.slane %v84, %v93
    %v95 = vmul.f32 %v74, %v90
    %v96 = vmul.f32 %v74, %v94
    %v97 = vadd.f32 %v69, %v95
    %v98 = vadd.f32 %v70, %v96
    %99 = vset.pattern.permute.xlu0 1
    %100 = vperm.xlu0 %99, %v41
    %v101 = vpop.permute.xlu0 %100
    %v103 = vlaneseq
    %v104 = vshrl.u32 %v103, 7
    %v105 = vsub.s32 1, %v104
    %v106 = vrot.slane %v43, %v105
    %v107 = vlaneseq
    %v108 = vshrl.u32 %v107, 7
    %v109 = vsub.s32 5, %v108
    %v110 = vrot.slane %v43, %v109
    %v113 = vlaneseq
    %v114 = vshrl.u32 %v113, 7
    %v115 = vsub.s32 1, %v114
    %v116 = vrot.slane %v106, %v115
    %v117 = vlaneseq
    %v118 = vshrl.u32 %v117, 7
    %v119 = vsub.s32 1, %v118
    %v120 = vrot.slane %v110, %v119
    %v121 = vmul.f32 %v101, %v116
    %v122 = vmul.f32 %v101, %v120
    %v123 = vadd.f32 %v97, %v121
    %v124 = vadd.f32 %v98, %v122
    %125 = vset.pattern.permute.xlu0 1
    %126 = vperm.xlu0 %125, %v42
    %v127 = vpop.permute.xlu0 %126
    %v129 = vlaneseq
    %v130 = vshrl.u32 %v129, 7
    %v131 = vsub.s32 1, %v130
    %v132 = vrot.slane %v44, %v131
    %v133 = vlaneseq
    %v134 = vshrl.u32 %v133, 7
    %v135 = vsub.s32 5, %v134
    %v136 = vrot.slane %v44, %v135
    %v139 = vlaneseq
    %v140 = vshrl.u32 %v139, 7
    %v141 = vsub.s32 1, %v140
    %v142 = vrot.slane %v132, %v141
    %v143 = vlaneseq
    %v144 = vshrl.u32 %v143, 7
    %v145 = vsub.s32 1, %v144
    %v146 = vrot.slane %v136, %v145
    %v147 = vmul.f32 %v127, %v142
    %v148 = vmul.f32 %v127, %v146
    %v149 = vadd.f32 %v123, %v147
    %v150 = vadd.f32 %v124, %v148
    %151 = vset.pattern.permute.xlu0 2
    %152 = vperm.xlu0 %151, %v41
    %v153 = vpop.permute.xlu0 %152
    %v155 = vlaneseq
    %v156 = vshrl.u32 %v155, 7
    %v157 = vsub.s32 2, %v156
    %v158 = vrot.slane %v43, %v157
    %v159 = vlaneseq
    %v160 = vshrl.u32 %v159, 7
    %v161 = vsub.s32 6, %v160
    %v162 = vrot.slane %v43, %v161
    %v165 = vlaneseq
    %v166 = vshrl.u32 %v165, 7
    %v167 = vsub.s32 2, %v166
    %v168 = vrot.slane %v158, %v167
    %v169 = vlaneseq
    %v170 = vshrl.u32 %v169, 7
    %v171 = vsub.s32 2, %v170
    %v172 = vrot.slane %v162, %v171
    %v173 = vmul.f32 %v153, %v168
    %v174 = vmul.f32 %v153, %v172
    %v175 = vadd.f32 %v149, %v173
    %v176 = vadd.f32 %v150, %v174
    %177 = vset.pattern.permute.xlu0 2
    %178 = vperm.xlu0 %177, %v42
    %v179 = vpop.permute.xlu0 %178
    %v181 = vlaneseq
    %v182 = vshrl.u32 %v181, 7
    %v183 = vsub.s32 2, %v182
    %v184 = vrot.slane %v44, %v183
    %v185 = vlaneseq
    %v186 = vshrl.u32 %v185, 7
    %v187 = vsub.s32 6, %v186
    %v188 = vrot.slane %v44, %v187
    %v191 = vlaneseq
    %v192 = vshrl.u32 %v191, 7
    %v193 = vsub.s32 2, %v192
    %v194 = vrot.slane %v184, %v193
    %v195 = vlaneseq
    %v196 = vshrl.u32 %v195, 7
    %v197 = vsub.s32 2, %v196
    %v198 = vrot.slane %v188, %v197
    %v199 = vmul.f32 %v179, %v194
    %v200 = vmul.f32 %v179, %v198
    %v201 = vadd.f32 %v175, %v199
    %v202 = vadd.f32 %v176, %v200
    %203 = vset.pattern.permute.xlu0 3
    %204 = vperm.xlu0 %203, %v41
    %v205 = vpop.permute.xlu0 %204
    %v207 = vlaneseq
    %v208 = vshrl.u32 %v207, 7
    %v209 = vsub.s32 3, %v208
    %v210 = vrot.slane %v43, %v209
    %v211 = vlaneseq
    %v212 = vshrl.u32 %v211, 7
    %v213 = vsub.s32 7, %v212
    %v214 = vrot.slane %v43, %v213
    %v217 = vlaneseq
    %v218 = vshrl.u32 %v217, 7
    %v219 = vsub.s32 3, %v218
    %v220 = vrot.slane %v210, %v219
    %v221 = vlaneseq
    %v222 = vshrl.u32 %v221, 7
    %v223 = vsub.s32 3, %v222
    %v224 = vrot.slane %v214, %v223
    %v225 = vmul.f32 %v205, %v220
    %v226 = vmul.f32 %v205, %v224
    %v227 = vadd.f32 %v201, %v225
    %v228 = vadd.f32 %v202, %v226
    %229 = vset.pattern.permute.xlu0 3
    %230 = vperm.xlu0 %229, %v42
    %v231 = vpop.permute.xlu0 %230
    %v233 = vlaneseq
    %v234 = vshrl.u32 %v233, 7
    %v235 = vsub.s32 3, %v234
    %v236 = vrot.slane %v44, %v235
    %v237 = vlaneseq
    %v238 = vshrl.u32 %v237, 7
    %v239 = vsub.s32 7, %v238
    %v240 = vrot.slane %v44, %v239
    %v243 = vlaneseq
    %v244 = vshrl.u32 %v243, 7
    %v245 = vsub.s32 3, %v244
    %v246 = vrot.slane %v236, %v245
    %v247 = vlaneseq
    %v248 = vshrl.u32 %v247, 7
    %v249 = vsub.s32 3, %v248
    %v250 = vrot.slane %v240, %v249
    %v251 = vmul.f32 %v231, %v246
    %v252 = vmul.f32 %v231, %v250
    %v253 = vadd.f32 %v227, %v251
    %v254 = vadd.f32 %v228, %v252
    %v257 = vcombine.low %v253, %v254
    %259 = vst [vmem:[#allocation7] sm:$0xff] %v257
    %s260 = scalar_lea.vmem [#allocation2], 8
    %v261 = vld [vmem:[%s260] sm:$0xff]
    %v262 = vmax.f32 %v261, 0.0
    %v264 = vlaneseq
    %v265 = vshrl.u32 %v264, 7
    %v266 = vsub.s32 0, %v265
    %v267 = vrot.slane %v261, %v266
    %v268 = vlaneseq
    %v269 = vshrl.u32 %v268, 7
    %v270 = vsub.s32 4, %v269
    %v271 = vrot.slane %v261, %v270
    %v274 = vlaneseq
    %v275 = vshrl.u32 %v274, 7
    %v276 = vsub.s32 0, %v275
    %v277 = vrot.slane %v267, %v276
    %v278 = vlaneseq
    %v279 = vshrl.u32 %v278, 7
    %v280 = vsub.s32 0, %v279
    %v281 = vrot.slane %v271, %v280
    %v282 = vmul.f32 %v48, %v277
    %v283 = vmul.f32 %v48, %v281
    %v285 = vlaneseq
    %v286 = vshrl.u32 %v285, 7
    %v287 = vsub.s32 0, %v286
    %v288 = vrot.slane %v262, %v287
    %v289 = vlaneseq
    %v290 = vshrl.u32 %v289, 7
    %v291 = vsub.s32 4, %v290
    %v292 = vrot.slane %v262, %v291
    %v295 = vlaneseq
    %v296 = vshrl.u32 %v295, 7
    %v297 = vsub.s32 0, %v296
    %v298 = vrot.slane %v288, %v297
    %v299 = vlaneseq
    %v300 = vshrl.u32 %v299, 7
    %v301 = vsub.s32 0, %v300
    %v302 = vrot.slane %v292, %v301
    %v303 = vmul.f32 %v74, %v298
    %v304 = vmul.f32 %v74, %v302
    %v305 = vadd.f32 %v282, %v303
    %v306 = vadd.f32 %v283, %v304
    %v307 = vlaneseq
    %v308 = vshrl.u32 %v307, 7
    %v309 = vsub.s32 1, %v308
    %v310 = vrot.slane %v261, %v309
    %v311 = vlaneseq
    %v312 = vshrl.u32 %v311, 7
    %v313 = vsub.s32 5, %v312
    %v314 = vrot.slane %v261, %v313
    %v317 = vlaneseq
    %v318 = vshrl.u32 %v317, 7
    %v319 = vsub.s32 1, %v318
    %v320 = vrot.slane %v310, %v319
    %v321 = vlaneseq
    %v322 = vshrl.u32 %v321, 7
    %v323 = vsub.s32 1, %v322
    %v324 = vrot.slane %v314, %v323
    %v325 = vmul.f32 %v101, %v320
    %v326 = vmul.f32 %v101, %v324
    %v327 = vadd.f32 %v305, %v325
    %v328 = vadd.f32 %v306, %v326
    %v329 = vlaneseq
    %v330 = vshrl.u32 %v329, 7
    %v331 = vsub.s32 1, %v330
    %v332 = vrot.slane %v262, %v331
    %v333 = vlaneseq
    %v334 = vshrl.u32 %v333, 7
    %v335 = vsub.s32 5, %v334
    %v336 = vrot.slane %v262, %v335
    %v339 = vlaneseq
    %v340 = vshrl.u32 %v339, 7
    %v341 = vsub.s32 1, %v340
    %v342 = vrot.slane %v332, %v341
    %v343 = vlaneseq
    %v344 = vshrl.u32 %v343, 7
    %v345 = vsub.s32 1, %v344
    %v346 = vrot.slane %v336, %v345
    %v347 = vmul.f32 %v127, %v342
    %v348 = vmul.f32 %v127, %v346
    %v349 = vadd.f32 %v327, %v347
    %v350 = vadd.f32 %v328, %v348
    %v351 = vlaneseq
    %v352 = vshrl.u32 %v351, 7
    %v353 = vsub.s32 2, %v352
    %v354 = vrot.slane %v261, %v353
    %v355 = vlaneseq
    %v356 = vshrl.u32 %v355, 7
    %v357 = vsub.s32 6, %v356
    %v358 = vrot.slane %v261, %v357
    %v361 = vlaneseq
    %v362 = vshrl.u32 %v361, 7
    %v363 = vsub.s32 2, %v362
    %v364 = vrot.slane %v354, %v363
    %v365 = vlaneseq
    %v366 = vshrl.u32 %v365, 7
    %v367 = vsub.s32 2, %v366
    %v368 = vrot.slane %v358, %v367
    %v369 = vmul.f32 %v153, %v364
    %v370 = vmul.f32 %v153, %v368
    %v371 = vadd.f32 %v349, %v369
    %v372 = vadd.f32 %v350, %v370
    %v373 = vlaneseq
    %v374 = vshrl.u32 %v373, 7
    %v375 = vsub.s32 2, %v374
    %v376 = vrot.slane %v262, %v375
    %v377 = vlaneseq
    %v378 = vshrl.u32 %v377, 7
    %v379 = vsub.s32 6, %v378
    %v380 = vrot.slane %v262, %v379
    %v383 = vlaneseq
    %v384 = vshrl.u32 %v383, 7
    %v385 = vsub.s32 2, %v384
    %v386 = vrot.slane %v376, %v385
    %v387 = vlaneseq
    %v388 = vshrl.u32 %v387, 7
    %v389 = vsub.s32 2, %v388
    %v390 = vrot.slane %v380, %v389
    %v391 = vmul.f32 %v179, %v386
    %v392 = vmul.f32 %v179, %v390
    %v393 = vadd.f32 %v371, %v391
    %v394 = vadd.f32 %v372, %v392
    %v395 = vlaneseq
    %v396 = vshrl.u32 %v395, 7
    %v397 = vsub.s32 3, %v396
    %v398 = vrot.slane %v261, %v397
    %v399 = vlaneseq
    %v400 = vshrl.u32 %v399, 7
    %v401 = vsub.s32 7, %v400
    %v402 = vrot.slane %v261, %v401
    %v405 = vlaneseq
    %v406 = vshrl.u32 %v405, 7
    %v407 = vsub.s32 3, %v406
    %v408 = vrot.slane %v398, %v407
    %v409 = vlaneseq
    %v410 = vshrl.u32 %v409, 7
    %v411 = vsub.s32 3, %v410
    %v412 = vrot.slane %v402, %v411
    %v413 = vmul.f32 %v205, %v408
    %v414 = vmul.f32 %v205, %v412
    %v415 = vadd.f32 %v393, %v413
    %v416 = vadd.f32 %v394, %v414
    %v417 = vlaneseq
    %v418 = vshrl.u32 %v417, 7
    %v419 = vsub.s32 3, %v418
    %v420 = vrot.slane %v262, %v419
    %v421 = vlaneseq
    %v422 = vshrl.u32 %v421, 7
    %v423 = vsub.s32 7, %v422
    %v424 = vrot.slane %v262, %v423
    %v427 = vlaneseq
    %v428 = vshrl.u32 %v427, 7
    %v429 = vsub.s32 3, %v428
    %v430 = vrot.slane %v420, %v429
    %v431 = vlaneseq
    %v432 = vshrl.u32 %v431, 7
    %v433 = vsub.s32 3, %v432
    %v434 = vrot.slane %v424, %v433
    %v435 = vmul.f32 %v231, %v430
    %v436 = vmul.f32 %v231, %v434
    %v437 = vadd.f32 %v415, %v435
    %v438 = vadd.f32 %v416, %v436
    %v441 = vcombine.low %v437, %v438
    %s443 = scalar_lea.vmem [#allocation7], 8
    %444 = vst [vmem:[%s443] sm:$0xff] %v441
    // Predicated region
    $region22: #{tpu_custom_call.1} parent=1 // pred_check
      _
    $region23: #{tpu_custom_call.1} parent=1 // pred_check_branch
      %446 = sbr.rel (0) target = $region25
    $region24: #{tpu_custom_call.1} parent=1 // pred_region
      %s448 = ssub.s32 256, 256
      %449 = vsyncadd [#allocation4], %s448
      %s450 = sshll.u32 [#allocation7], 4
      %s451 = int_to_ptr.vmem [resolvable:$true] %s450
      %456 = dma.vmem_to_hbm [thread:$0]  %s451, 256, %s3, [#allocation4], 128, 128, 8
    $region25: #{tpu_custom_call.1} parent=1 // pred_fallthru
      _
    // Predicated region
    $region26: #{tpu_custom_call.1} parent=1 // pred_check
      _
    $region27: #{tpu_custom_call.1} parent=1 // pred_check_branch
      %458 = sbr.rel (0) target = $region29
    $region28: #{tpu_custom_call.1} parent=1 // pred_region
      %459 = dma.done [#allocation4], 256
    $region29: #{tpu_custom_call.1} parent=1 // pred_fallthru
      _
    %460 = vsyncpa [#allocation3], 1
    %461 = vsyncpa [#allocation6], 1
    %462 = vsyncpa [#allocation4], 1

</llo_original>
